<compile_context>
chip_gen: v7x
topology: tpu7x:2x2x1
jax: 0.10.0
libtpu: 0.0.40
codegen_flags: <defaults>
</compile_context>

<pallas_src>
import jax
import jax.numpy as jnp
import numpy as np
from jax.experimental import pallas as pl
from jax.experimental.pallas import tpu as pltpu


def _round_up(a, b):
    return ((a + b - 1) // b) * b


def _leaky_relu(x, negative_slope=0.3):
    return jnp.where(x >= 0, x, negative_slope * x)


def _make_mlp_kernel(num_linear_layers):
    """Kernel body for an MLP with `num_linear_layers` Linear layers (feature-major layout).

    Ref order: x_ref, wb_ref_0 .. wb_ref_{L-1}, o_ref
      x_ref  : [inputDim, tile]               (batch on the lane axis)
      wb_ref : [out_i, in_i + 1]              (last column is the bias)
      o_ref  : [outputDim, tile]
    LeakyReLU(0.3) follows every Linear except the last (matches anisoSGS.__init__).
    """

    def kernel(*refs):
        x_ref = refs[0]
        o_ref = refs[-1]
        wb_refs = refs[1:-1]

        h = x_ref[...].astype(jnp.float32)                 # [in, tile]
        for layer in range(num_linear_layers):
            wb = wb_refs[layer][...]                       # [out, in+1]
            w = wb[:, :-1]                                 # [out, in]   (PyTorch layout)
            b = wb[:, -1:]                                 # [out, 1] -> lane broadcast
            h = jnp.dot(w, h, preferred_element_type=jnp.float32) + b
            if layer != num_linear_layers - 1:
                h = _leaky_relu(h, 0.3)
        o_ref[...] = h.astype(o_ref.dtype)

    return kernel


def aniso_sgs_forward(x, weights, biases, *, tile_n=8192):
    """Run the anisoSGS MLP forward pass with a Pallas TPU kernel.

    x:       [N, inputDim] float32 (PyTorch sample-major layout)
    weights: list of [out_i, in_i] float32 (PyTorch nn.Linear weight layout)
    biases:  list of [out_i]       float32
    returns: [N, outputDim] float32
    """
    N, nd_in = x.shape
    assert weights[0].shape[1] == nd_in
    nd_out = weights[-1].shape[0]
    num_linear = len(weights)

    # Batch tile: as large as requested, multiple of 128 (lane constraint), no larger than
    # the (128-rounded) batch.  Arbitrary N is handled by zero-padding, not an assert.
    tile = min(int(tile_n), _round_up(N, 128))
    tile = _round_up(tile, 128)
    n_pad = _round_up(N, tile)
    grid = n_pad // tile

    # Lane-dense, feature-major view of the batch ([inputDim, N_pad]), zero-padded.
    x_fm = jnp.zeros((nd_in, n_pad), x.dtype).at[:, :N].set(x.T)

    # Pack each layer's weight and bias into a single [out, in+1] block.
    wb = [
        jnp.concatenate(
            [w.astype(jnp.float32), b.reshape(-1, 1).astype(jnp.float32)], axis=1
        )
        for w, b in zip(weights, biases)
    ]

    kernel = _make_mlp_kernel(num_linear)

    in_specs = [pl.BlockSpec((nd_in, tile), lambda i: (0, i))]
    for a in wb:
        # Full-array blocks for the tiny parameter tensors (same block every grid step).
        in_specs.append(pl.BlockSpec(a.shape, lambda i: (0, 0)))
    out_spec = pl.BlockSpec((nd_out, tile), lambda i: (0, i))

    out_fm = pl.pallas_call(
        kernel,
        out_shape=jax.ShapeDtypeStruct((nd_out, n_pad), x.dtype),
        grid_spec=pltpu.PrefetchScalarGridSpec(
            num_scalar_prefetch=0,
            grid=(grid,),
            in_specs=in_specs,
            out_specs=out_spec,
        ),
        compiler_params=pltpu.CompilerParams(
            dimension_semantics=("parallel",),
        ),
    )(x_fm, *wb)

    # Back to the caller's sample-major layout, dropping the padded columns.
    return out_fm[:, :N].T


def init_aniso_sgs_params(key, input_dim=6, output_dim=6, num_neurons=20, num_layers=1):
    """Deterministic init mimicking torch.nn.Linear's default
    U(-1/sqrt(fan_in), 1/sqrt(fan_in)) for both weights and biases.

    Returns PyTorch-layout weights [out, in] and biases [out].
    """
    dims = [input_dim] + [num_neurons] * num_layers + [output_dim]
    weights, biases = [], []
    for li in range(len(dims) - 1):
        fan_in, fan_out = dims[li], dims[li + 1]
        key, kw, kb = jax.random.split(key, 3)
        bound = 1.0 / np.sqrt(fan_in)
        w = jax.random.uniform(kw, (fan_out, fan_in), jnp.float32, -bound, bound)
        b = jax.random.uniform(kb, (fan_out,), jnp.float32, -bound, bound)
        weights.append(w)
        biases.append(b)
    return weights, biases


def aniso_sgs_reference(x, weights, biases):
    """Pure-JAX reference of the same forward pass (PyTorch semantics: x @ W.T + b)."""
    h = x
    num_linear = len(weights)
    for li, (w, b) in enumerate(zip(weights, biases)):
        h = h @ w.T + b
        if li != num_linear - 1:
            h = _leaky_relu(h, 0.3)
    return h


if __name__ == "__main__":
    key = jax.random.PRNGKey(0)

    # Config 1: anisoSGS defaults (inputDim=6, outputDim=6, numNeurons=20, numLayers=1).
    # N is NOT a multiple of the tile (exercises padding) and tile_n=512 gives grid=2
    # (exercises the multi-step / megacore-parallel path).
    key, kx, kp = jax.random.split(key, 3)
    N = 1000
    x = jax.random.normal(kx, (N, 6), dtype=jnp.float32)
    weights, biases = init_aniso_sgs_params(kp, 6, 6, 20, 1)
    out = jax.block_until_ready(aniso_sgs_forward(x, weights, biases, tile_n=512))
    ref = aniso_sgs_reference(x, weights, biases)
    assert out.shape == (N, 6)
    np.testing.assert_allclose(np.asarray(out), np.asarray(ref), rtol=1e-5, atol=1e-5)

    # Config 2: deeper model (numLayers=3), default large tile -> single grid step.
    key, kx2, kp2 = jax.random.split(key, 3)
    N2 = 384
    x2 = jax.random.normal(kx2, (N2, 6), dtype=jnp.float32)
    w2, b2 = init_aniso_sgs_params(kp2, 6, 6, 20, 3)
    out2 = jax.block_until_ready(aniso_sgs_forward(x2, w2, b2))
    ref2 = aniso_sgs_reference(x2, w2, b2)
    assert out2.shape == (N2, 6)
    np.testing.assert_allclose(np.asarray(out2), np.asarray(ref2), rtol=1e-5, atol=1e-5)

    # TODO(synk): training_step / data-loading / eigen-decomposition preprocessing
    # (comp_ins_outs_SGS) are host-side utilities, not part of forward(); not ported.
    print("KERNEL_OK")
</pallas_src>

<mosaic_0001>
module attributes {stable_mosaic.version = 11 : i64} {
  func.func @kernel(%arg0: i32, %arg1: memref<6x512xf32, #tpu.memory_space<vmem>>, %arg2: memref<20x7xf32, #tpu.memory_space<vmem>>, %arg3: memref<6x21xf32, #tpu.memory_space<vmem>>, %arg4: memref<6x512xf32, #tpu.memory_space<vmem>>) attributes {dimension_semantics = [#tpu.dimension_semantics<parallel>], iteration_bounds = array<i64: 2>, scalar_prefetch = 0 : i64, scratch_operands = 0 : i64, tpu.core_type = #tpu.core_type<tc>, window_params = [{transform_indices = @transform_0, window_bounds = array<i64: 6, 512>}, {pipeline_mode = #tpu.pipeline_mode<synchronous>, transform_indices = @transform_1, window_bounds = array<i64: 20, 7>}, {pipeline_mode = #tpu.pipeline_mode<synchronous>, transform_indices = @transform_2, window_bounds = array<i64: 6, 21>}, {transform_indices = @transform_3, window_bounds = array<i64: 6, 512>}]} {
    %c0 = arith.constant 0 : index
    %c0_0 = arith.constant 0 : index
    %0 = vector.load %arg1[%c0, %c0_0] : memref<6x512xf32, #tpu.memory_space<vmem>>, vector<6x512xf32>
    %c0_1 = arith.constant 0 : index
    %c0_2 = arith.constant 0 : index
    %1 = vector.load %arg2[%c0_1, %c0_2] : memref<20x7xf32, #tpu.memory_space<vmem>>, vector<20x7xf32>
    %2 = vector.extract_strided_slice %1 {offsets = [0, 0], sizes = [20, 6], strides = [1, 1]} : vector<20x7xf32> to vector<20x6xf32>
    %3 = vector.extract_strided_slice %1 {offsets = [0, 6], sizes = [20, 1], strides = [1, 1]} : vector<20x7xf32> to vector<20x1xf32>
    %cst = arith.constant dense<0.000000e+00> : vector<20x512xf32>
    %4 = tpu.matmul %2, %0, %cst {dimension_numbers = #tpu.dot_dimension_numbers<[1], [0], [0], [1], [0, 0, 1, 1], [], []>} : vector<20x6xf32>, vector<6x512xf32>, vector<20x512xf32> -> vector<20x512xf32>
    %5 = vector.broadcast %3 : vector<20x1xf32> to vector<20x512xf32>
    %6 = arith.addf %4, %5 : vector<20x512xf32>
    %cst_3 = arith.constant 0.000000e+00 : f32
    %7 = vector.broadcast %cst_3 : f32 to vector<20x512xf32>
    %8 = arith.cmpf oge, %6, %7 : vector<20x512xf32>
    %cst_4 = arith.constant 3.000000e-01 : f32
    %9 = vector.broadcast %cst_4 : f32 to vector<20x512xf32>
    %10 = arith.mulf %9, %6 : vector<20x512xf32>
    %11 = arith.select %8, %6, %10 : vector<20x512xi1>, vector<20x512xf32>
    %c0_5 = arith.constant 0 : index
    %c0_6 = arith.constant 0 : index
    %12 = vector.load %arg3[%c0_5, %c0_6] : memref<6x21xf32, #tpu.memory_space<vmem>>, vector<6x21xf32>
    %13 = vector.extract_strided_slice %12 {offsets = [0, 0], sizes = [6, 20], strides = [1, 1]} : vector<6x21xf32> to vector<6x20xf32>
    %14 = vector.extract_strided_slice %12 {offsets = [0, 20], sizes = [6, 1], strides = [1, 1]} : vector<6x21xf32> to vector<6x1xf32>
    %cst_7 = arith.constant dense<0.000000e+00> : vector<6x512xf32>
    %15 = tpu.matmul %13, %11, %cst_7 {dimension_numbers = #tpu.dot_dimension_numbers<[1], [0], [0], [1], [0, 0, 1, 1], [], []>} : vector<6x20xf32>, vector<20x512xf32>, vector<6x512xf32> -> vector<6x512xf32>
    %16 = vector.broadcast %14 : vector<6x1xf32> to vector<6x512xf32>
    %17 = arith.addf %15, %16 : vector<6x512xf32>
    %c0_8 = arith.constant 0 : index
    %c0_9 = arith.constant 0 : index
    %18 = vector.load %arg4[%c0_8, %c0_9] : memref<6x512xf32, #tpu.memory_space<vmem>>, vector<6x512xf32>
    tpu.vector_store %arg4[%c0_8, %c0_9], %17 {strides = array<i32>} : memref<6x512xf32, #tpu.memory_space<vmem>>, vector<6x512xf32>,
    return
  }
  func.func @transform_0(%arg0: i32) -> (i32, i32) {
    %c0_i32 = arith.constant 0 : i32
    %c0_i32_0 = arith.constant 0 : i32
    return %c0_i32, %arg0 : i32, i32
  }
  func.func @transform_1(%arg0: i32) -> (i32, i32) {
    %c0_i32 = arith.constant 0 : i32
    %c0_i32_0 = arith.constant 0 : i32
    %c0_i32_1 = arith.constant 0 : i32
    return %c0_i32, %c0_i32_0 : i32, i32
  }
  func.func @transform_2(%arg0: i32) -> (i32, i32) {
    %c0_i32 = arith.constant 0 : i32
    %c0_i32_0 = arith.constant 0 : i32
    %c0_i32_1 = arith.constant 0 : i32
    return %c0_i32, %c0_i32_0 : i32, i32
  }
  func.func @transform_3(%arg0: i32) -> (i32, i32) {
    %c0_i32 = arith.constant 0 : i32
    %c0_i32_0 = arith.constant 0 : i32
    return %c0_i32, %arg0 : i32, i32
  }
}

</mosaic_0001>

<llo_original>
// kernel: tpu_custom_call.1
$region0: #{tpu_custom_call.1}
  #allocation0 [shape = 'u32[]', space=smem, size = 0x4, offset = 0x4, fixed_abs, tag = 'smem constant byte address 0x4 - core index']
  #allocation1 [shape = 'u32[144,128]{1,0:T(1,128)}', space=vmem, size = 0x12000, scoped, tag = 'internal scratch']
  %s0 = inlined_call_operand.hbm [shape: f32[6,1024], index: 0, kind: input, shape index: {}]
  %s1 = inlined_call_operand.vmem [shape: f32[20,7], index: 1, kind: input, shape index: {}]
  %s2 = inlined_call_operand.vmem [shape: f32[6,21], index: 2, kind: input, shape index: {}]
  %s3 = inlined_call_operand.hbm [shape: f32[6,1024], index: 3, kind: output, shape index: {}]
  %s4 = sld [smem:[#allocation0]]
  $region49: #{tpu_custom_call.1} parent=0
    _
  %s6 = ssub.s32 1, %s4
  %s7 = scalar_select 0, %s6, %s4
  $region1: #{tpu_custom_call.1} parent=0
    #allocation2 [shape = 'u8[32768]{0}', space=vmem, size = 0x8000, scoped, tag = 'input window, operand 0']
    #allocation3 [shape = 's32[2]{0}', space=sflag, size = 0x8, scoped, tag = 'scoped memory for tpu_custom_call.1']
    #allocation4 [shape = 's32[2]{0}', space=sflag, size = 0x8, scoped, tag = 'scoped memory for tpu_custom_call.1']
    #allocation5 [shape = 'u8[32768]{0}', space=vmem, size = 0x8000, scoped, tag = 'output window, operand 0']
    %8 = vsyncpa [#allocation3], 0
    %s9 = scalar_lea.sflag [#allocation3], 1
    %10 = vsyncpa %s9, 0
    %11 = vsyncpa [#allocation4], 0
    %s12 = scalar_lea.sflag [#allocation4], 1
    %13 = vsyncpa %s12, 0
    loop: start=0, step=1, limit=4
    $region2: #{tpu_custom_call.1} parent=1 // loop_pre_header
      _
    $region3: #{tpu_custom_call.1} parent=1 // loop_header
      %s15 = sphi 0, %s19
      %p16 = scmp.ge.s32.totalorder %s15, 4
      %s25 = sphi 0, %s27
      %s28 = sphi 0, %s25
      %s29 = sphi 0, %s28
      %s45 = sphi 0, %s29
      %s49 = sphi 0, %s49
      %s51 = sphi 0, %s49
      %s52 = sphi 0, %s51
      %s66 = sphi 0, %s52
      %s70 = sphi 0, %s70
      %s72 = sphi 0, %s70
      %s73 = sphi 0, %s72
      %s87 = sphi 0, %s73
      %s93 = sphi 0, %s95
      %s96 = sphi 0, %s93
      %s97 = sphi 0, %s96
      %s113 = sphi 0, %s97
    $region4: #{tpu_custom_call.1} parent=1 // loop_header_branch
      %18 = sbr.rel (%p16) target = $region8
    $region5: #{tpu_custom_call.1} parent=1 // loop_body
      %s20 = ssub.s32 %s15, 1
      %s21 = ssub.s32 %s15, 2
      %s22 = sadd.s32 %s15, 1
      %s23 = ssub.s32 %s15, %s22
      %p24 = scmp.eq.s32.totalorder %s23, 0
      %s26 = sadd.s32 %s25, 1
      %s27 = scalar_select %p24, %s25, %s26
      %p30 = pneg %p24
      %p31 = scmp.eq.s32.totalorder %s15, 1
      %p32 = por %p30, %p31
      %p33 = scmp.ne.s32.totalorder %s25, %s28
      %p34 = scmp.eq.s32.totalorder %s15, 0
      %p35 = por %p33, %p34
      %p36 = scmp.ne.s32.totalorder %s25, %s28
      %p37 = scmp.eq.s32.totalorder %s20, 1
      %p38 = por %p36, %p37
      %p39 = scmp.ne.s32.totalorder %s28, %s29
      %p40 = scmp.eq.s32.totalorder %s20, 0
      %p41 = por %p39, %p40
      %p42 = scmp.ne.s32.totalorder %s28, %s29
      %p43 = scmp.eq.s32.totalorder %s21, 1
      %p44 = por %p42, %p43
      %p46 = scmp.ne.s32.totalorder %s29, %s45
      %p47 = scmp.eq.s32.totalorder %s21, 0
      %p48 = por %p46, %p47
      %s50 = sadd.s32 %s49, 1
      %p53 = scmp.eq.s32.totalorder %s15, 1
      %p54 = scmp.ne.s32.totalorder %s49, %s51
      %p55 = scmp.eq.s32.totalorder %s15, 0
      %p56 = por %p54, %p55
      %p57 = scmp.ne.s32.totalorder %s49, %s51
      %p58 = scmp.eq.s32.totalorder %s20, 1
      %p59 = por %p57, %p58
      %p60 = scmp.ne.s32.totalorder %s51, %s52
      %p61 = scmp.eq.s32.totalorder %s20, 0
      %p62 = por %p60, %p61
      %p63 = scmp.ne.s32.totalorder %s51, %s52
      %p64 = scmp.eq.s32.totalorder %s21, 1
      %p65 = por %p63, %p64
      %p67 = scmp.ne.s32.totalorder %s52, %s66
      %p68 = scmp.eq.s32.totalorder %s21, 0
      %p69 = por %p67, %p68
      %s71 = sadd.s32 %s70, 1
      %p74 = scmp.eq.s32.totalorder %s15, 1
      %p75 = scmp.ne.s32.totalorder %s70, %s72
      %p76 = scmp.eq.s32.totalorder %s15, 0
      %p77 = por %p75, %p76
      %p78 = scmp.ne.s32.totalorder %s70, %s72
      %p79 = scmp.eq.s32.totalorder %s20, 1
      %p80 = por %p78, %p79
      %p81 = scmp.ne.s32.totalorder %s72, %s73
      %p82 = scmp.eq.s32.totalorder %s20, 0
      %p83 = por %p81, %p82
      %p84 = scmp.ne.s32.totalorder %s72, %s73
      %p85 = scmp.eq.s32.totalorder %s21, 1
      %p86 = por %p84, %p85
      %p88 = scmp.ne.s32.totalorder %s73, %s87
      %p89 = scmp.eq.s32.totalorder %s21, 0
      %p90 = por %p88, %p89
      %s91 = ssub.s32 %s15, %s22
      %p92 = scmp.eq.s32.totalorder %s91, 0
      %s94 = sadd.s32 %s93, 1
      %s95 = scalar_select %p92, %s93, %s94
      %p98 = pneg %p92
      %p99 = scmp.eq.s32.totalorder %s15, 1
      %p100 = por %p98, %p99
      %p101 = scmp.ne.s32.totalorder %s93, %s96
      %p102 = scmp.eq.s32.totalorder %s15, 0
      %p103 = por %p101, %p102
      %p104 = scmp.ne.s32.totalorder %s93, %s96
      %p105 = scmp.eq.s32.totalorder %s20, 1
      %p106 = por %p104, %p105
      %p107 = scmp.ne.s32.totalorder %s96, %s97
      %p108 = scmp.eq.s32.totalorder %s20, 0
      %p109 = por %p107, %p108
      %p110 = scmp.ne.s32.totalorder %s96, %s97
      %p111 = scmp.eq.s32.totalorder %s21, 1
      %p112 = por %p110, %p111
      %p114 = scmp.ne.s32.totalorder %s97, %s113
      %p115 = scmp.eq.s32.totalorder %s21, 0
      %p116 = por %p114, %p115
      %p117 = scmp.le.s32.totalorder 1, %s15
      %p118 = scmp.lt.s32.totalorder %s15, 3
      %p119 = pnand %p117, %p118
      %p120 = pneg %p119
      // Predicated region
      $region9: #{tpu_custom_call.1} parent=5 // pred_check
        _
      $region10: #{tpu_custom_call.1} parent=5 // pred_check_branch
        %122 = sbr.rel (%p119) target = $region12
      $region11: #{tpu_custom_call.1} parent=5 // pred_region
        %s123 = ssub.s32 %s15, 1
        // Predicated region
        $region13: #{tpu_custom_call.1} parent=11 // pred_check
          %p124 = pneg %p62
        $region14: #{tpu_custom_call.1} parent=11 // pred_check_branch
          %126 = sbr.rel (%p124) target = $region16
        $region15: #{tpu_custom_call.1} parent=11 // pred_region
          _
        $region16: #{tpu_custom_call.1} parent=11 // pred_fallthru
          _
        // Predicated region
        $region17: #{tpu_custom_call.1} parent=11 // pred_check
          %p127 = pneg %p83
        $region18: #{tpu_custom_call.1} parent=11 // pred_check_branch
          %129 = sbr.rel (%p127) target = $region20
        $region19: #{tpu_custom_call.1} parent=11 // pred_region
          _
        $region20: #{tpu_custom_call.1} parent=11 // pred_fallthru
          _
      $region12: #{tpu_custom_call.1} parent=5 // pred_fallthru
        _
      %p130 = scmp.lt.s32.totalorder %s15, 2
      // Predicated region
      $region21: #{tpu_custom_call.1} parent=5 // pred_check
        %p131 = pneg %p130
      $region22: #{tpu_custom_call.1} parent=5 // pred_check_branch
        %133 = sbr.rel (%p131) target = $region24
      $region23: #{tpu_custom_call.1} parent=5 // pred_region
        // Predicated region
        $region25: #{tpu_custom_call.1} parent=23 // pred_check
          %p134 = pneg %p35
        $region26: #{tpu_custom_call.1} parent=23 // pred_check_branch
          %136 = sbr.rel (%p134) target = $region28
        $region27: #{tpu_custom_call.1} parent=23 // pred_region
          %s137 = sand.u32 %s25, 1
          %s138 = scalar_lea.sflag [#allocation3], %s137
          %s139 = sand.u32 %s25, 1
          %s140 = smul.addr %s139, 32
          %s141 = scalar_lea.vmem [#allocation2], %s140
          %s142 = smul.u32 4, %s15
          %s144 = ssub.s32 512, 512
          %145 = vsyncadd %s138, %s144
          %s146 = smul.addr %s142, 128
          %s147 = scalar_lea.hbm %s0, %s146
          %s149 = sshll.u32 %s141, 4
          %s150 = int_to_ptr.vmem [resolvable:$true] %s149
          %152 = dma.hbm_to_vmem [thread:$0]  %s147, 512, %s150, %s138
        $region28: #{tpu_custom_call.1} parent=23 // pred_fallthru
          _
      $region24: #{tpu_custom_call.1} parent=5 // pred_fallthru
        _
      %p153 = scmp.le.s32.totalorder 1, %s15
      %p154 = scmp.lt.s32.totalorder %s15, 3
      %p155 = pnand %p153, %p154
      %p156 = pneg %p155
      // Predicated region
      $region29: #{tpu_custom_call.1} parent=5 // pred_check
        _
      $region30: #{tpu_custom_call.1} parent=5 // pred_check_branch
        %158 = sbr.rel (%p155) target = $region32
      $region31: #{tpu_custom_call.1} parent=5 // pred_region
        %s159 = ssub.s32 %s15, 1
        %s160 = sand.u32 %s28, 1
        %s161 = scalar_lea.sflag [#allocation3], %s160
        %s162 = sand.u32 %s28, 1
        %s163 = smul.addr %s162, 32
        %s164 = scalar_lea.vmem [#allocation2], %s163
        // Predicated region
        $region33: #{tpu_custom_call.1} parent=31 // pred_check
          %p165 = pneg %p41
        $region34: #{tpu_custom_call.1} parent=31 // pred_check_branch
          %167 = sbr.rel (%p165) target = $region36
        $region35: #{tpu_custom_call.1} parent=31 // pred_region
          %168 = dma.done %s161, 512
        $region36: #{tpu_custom_call.1} parent=31 // pred_fallthru
          _
        %s169 = sand.u32 %s28, 1
        %s170 = scalar_lea.sflag [#allocation3], %s169
        %s171 = sand.u32 %s28, 1
        %s172 = smul.addr %s171, 32
        %s173 = scalar_lea.vmem [#allocation2], %s172
        %p174 = pneg %p41
        %p175 = pneg %p38
        %p176 = pneg %p62
        %p177 = pneg %p59
        %p178 = pneg %p83
        %p179 = pneg %p80
        %p180 = pneg %p109
        %p181 = pneg %p106
        %s182 = sand.u32 %s96, 1
        %s183 = scalar_lea.sflag [#allocation4], %s182
        %s184 = sand.u32 %s96, 1
        %s185 = smul.addr %s184, 32
        %s186 = scalar_lea.vmem [#allocation5], %s185
        %s187 = smul.u32 4, %s20
        %s188 = smul.u32 4, %s20
        %v189 = vld [vmem:[%s164] sm:$0x3f]
        %v190 = vld [vmem:[%s164 + $0x8] sm:$0x3f]
        %v191 = vld [vmem:[%s164 + $0x10] sm:$0x3f]
        %v192 = vld [vmem:[%s164 + $0x18] sm:$0x3f]
        %v193 = vld [vmem:[%s1] sm:$0xff]
        %v194 = vld [vmem:[%s1 + $0x8] sm:$0xff]
        %v195 = vld [vmem:[%s1 + $0x10] sm:$0xf]
        %197 = vset.pattern.permute.xlu0 6
        %198 = vperm.xlu0 %197, %v193
        %v199 = vpop.permute.xlu0 %198
        %202 = vset.pattern.permute.xlu0 6
        %203 = vperm.xlu0 %202, %v194
        %v204 = vpop.permute.xlu0 %203
        %207 = vset.pattern.permute.xlu0 6
        %208 = vperm.xlu0 %207, %v195
        %v209 = vpop.permute.xlu0 %208
        %vm211 = vcmask 48128
        %v212 = vsel %vm211, %v193, 0
        %v214 = vsel %vm211, %v194, 0
        %v216 = vsel %vm211, %v195, 0
        %vm218 = vcmask 1045504
        %v220 = vsel %vm218, %v189, 0
        %v223 = vsel %vm218, %v190, 0
        %v226 = vsel %vm218, %v191, 0
        %v229 = vsel %vm218, %v192, 0
        %231 = vmatprep.subr.mxu0 %v223
        %232 = vmatpush1.msra.mxu0 %v220
        %233 = vmatprep.subr.mxu0 0.0
        %234 = vmatpush1.msra.mxu0 0.0
        %235 = vmatprep.subr.mxu0 0.0
        %236 = vmatpush1.msra.mxu0 0.0
        %237 = vmatprep.subr.mxu0 0.0
        %238 = vmatpush1.msra.mxu0 0.0
        %239 = vmatprep.subr.mxu0 0.0
        %240 = vmatpush1.msra.mxu0 0.0
        %241 = vmatprep.subr.mxu0 0.0
        %242 = vmatpush1.msra.mxu0 0.0
        %243 = vmatprep.subr.mxu0 0.0
        %244 = vmatpush1.msra.mxu0 0.0
        %245 = vmatprep.subr.mxu0 0.0
        %246 = vmatpush1.msra.mxu0 0.0
        %247 = vmatprep.subr.mxu0 0.0
        %248 = vmatpush1.msra.mxu0 0.0
        %249 = vmatprep.subr.mxu0 0.0
        %250 = vmatpush1.msra.mxu0 0.0
        %251 = vmatprep.subr.mxu0 0.0
        %252 = vmatpush1.msra.mxu0 0.0
        %253 = vmatprep.subr.mxu0 0.0
        %254 = vmatpush1.msra.mxu0 0.0
        %255 = vmatprep.subr.mxu0 0.0
        %256 = vmatpush1.msra.mxu0 0.0
        %257 = vmatprep.subr.mxu0 0.0
        %258 = vmatpush1.msra.mxu0 0.0
        %259 = vmatprep.subr.mxu0 0.0
        %260 = vmatpush1.msra.mxu0 0.0
        %261 = vmatprep.subr.mxu0 0.0
        %262 = vmatpush1.msra.mxu0 0.0
        %263 = vmatprep.subr.mxu0 0.0
        %264 = vmatpush1.msra.mxu0 0.0
        %265 = vmatprep.subr.mxu0 0.0
        %266 = vmatpush1.msra.mxu0 0.0
        %267 = vmatprep.subr.mxu0 0.0
        %268 = vmatpush1.msra.mxu0 0.0
        %269 = vmatprep.subr.mxu0 0.0
        %270 = vmatpush1.msra.mxu0 0.0
        %271 = vmatprep.subr.mxu0 0.0
        %272 = vmatpush1.msra.mxu0 0.0
        %273 = vmatprep.subr.mxu0 0.0
        %274 = vmatpush1.msra.mxu0 0.0
        %275 = vmatprep.subr.mxu0 0.0
        %276 = vmatpush1.msra.mxu0 0.0
        %277 = vmatprep.subr.mxu0 0.0
        %278 = vmatpush1.msra.mxu0 0.0
        %279 = vmatprep.subr.mxu0 0.0
        %280 = vmatpush1.msra.mxu0 0.0
        %281 = vmatprep.subr.mxu0 0.0
        %282 = vmatpush1.msra.mxu0 0.0
        %283 = vmatprep.subr.mxu0 0.0
        %284 = vmatpush1.msra.mxu0 0.0
        %285 = vmatprep.subr.mxu0 0.0
        %286 = vmatpush1.msra.mxu0 0.0
        %287 = vmatprep.subr.mxu0 0.0
        %288 = vmatpush1.msra.mxu0 0.0
        %289 = vmatprep.subr.mxu0 0.0
        %290 = vmatpush1.msra.mxu0 0.0
        %291 = vmatprep.subr.mxu0 0.0
        %292 = vmatpush1.msra.mxu0 0.0
        %293 = vmatprep.subr.mxu0 0.0
        %294 = vmatpush1.msra.mxu0 0.0
        %295 = vmatprep.mubr.f32.mxu0 0.0
        %296 = vmatmul.mubr.f32.gmra.mrb[0].mxu0 %v212
        %v297 = vpop.f32.mrb[0].mxu0
        %v298 = vadd.f32 %v199, %v297
        %v299 = vpop.f32.mrb[0].mxu0
        %v300 = vadd.f32 %v199, %v299
        %301 = vmatprep.mubr.f32.mxu0 0.0
        %302 = vmatmul.mubr.f32.gmra.mrb[0].mxu0 %v214
        %v303 = vpop.f32.mrb[0].mxu0
        %v304 = vadd.f32 %v204, %v303
        %v305 = vpop.f32.mrb[0].mxu0
        %v306 = vadd.f32 %v204, %v305
        %307 = vmatprep.mubr.f32.mxu0 0.0
        %308 = vmatmul.mubr.f32.gmra.mrb[0].mxu0 %v216
        %v309 = vpop.f32.mrb[0].mxu0
        %v310 = vadd.f32 %v209, %v309
        %v311 = vpop.f32.mrb[0].mxu0
        %v312 = vadd.f32 %v209, %v311
        %313 = vdwg.mxu0
        %314 = vmatprep.subr.mxu0 %v229
        %315 = vmatpush1.msra.mxu0 %v226
        %316 = vmatprep.subr.mxu0 0.0
        %317 = vmatpush1.msra.mxu0 0.0
        %318 = vmatprep.subr.mxu0 0.0
        %319 = vmatpush1.msra.mxu0 0.0
        %320 = vmatprep.subr.mxu0 0.0
        %321 = vmatpush1.msra.mxu0 0.0
        %322 = vmatprep.subr.mxu0 0.0
        %323 = vmatpush1.msra.mxu0 0.0
        %324 = vmatprep.subr.mxu0 0.0
        %325 = vmatpush1.msra.mxu0 0.0
        %326 = vmatprep.subr.mxu0 0.0
        %327 = vmatpush1.msra.mxu0 0.0
        %328 = vmatprep.subr.mxu0 0.0
        %329 = vmatpush1.msra.mxu0 0.0
        %330 = vmatprep.subr.mxu0 0.0
        %331 = vmatpush1.msra.mxu0 0.0
        %332 = vmatprep.subr.mxu0 0.0
        %333 = vmatpush1.msra.mxu0 0.0
        %334 = vmatprep.subr.mxu0 0.0
        %335 = vmatpush1.msra.mxu0 0.0
        %336 = vmatprep.subr.mxu0 0.0
        %337 = vmatpush1.msra.mxu0 0.0
        %338 = vmatprep.subr.mxu0 0.0
        %339 = vmatpush1.msra.mxu0 0.0
        %340 = vmatprep.subr.mxu0 0.0
        %341 = vmatpush1.msra.mxu0 0.0
        %342 = vmatprep.subr.mxu0 0.0
        %343 = vmatpush1.msra.mxu0 0.0
        %344 = vmatprep.subr.mxu0 0.0
        %345 = vmatpush1.msra.mxu0 0.0
        %346 = vmatprep.subr.mxu0 0.0
        %347 = vmatpush1.msra.mxu0 0.0
        %348 = vmatprep.subr.mxu0 0.0
        %349 = vmatpush1.msra.mxu0 0.0
        %350 = vmatprep.subr.mxu0 0.0
        %351 = vmatpush1.msra.mxu0 0.0
        %352 = vmatprep.subr.mxu0 0.0
        %353 = vmatpush1.msra.mxu0 0.0
        %354 = vmatprep.subr.mxu0 0.0
        %355 = vmatpush1.msra.mxu0 0.0
        %356 = vmatprep.subr.mxu0 0.0
        %357 = vmatpush1.msra.mxu0 0.0
        %358 = vmatprep.subr.mxu0 0.0
        %359 = vmatpush1.msra.mxu0 0.0
        %360 = vmatprep.subr.mxu0 0.0
        %361 = vmatpush1.msra.mxu0 0.0
        %362 = vmatprep.subr.mxu0 0.0
        %363 = vmatpush1.msra.mxu0 0.0
        %364 = vmatprep.subr.mxu0 0.0
        %365 = vmatpush1.msra.mxu0 0.0
        %366 = vmatprep.subr.mxu0 0.0
        %367 = vmatpush1.msra.mxu0 0.0
        %368 = vmatprep.subr.mxu0 0.0
        %369 = vmatpush1.msra.mxu0 0.0
        %370 = vmatprep.subr.mxu0 0.0
        %371 = vmatpush1.msra.mxu0 0.0
        %372 = vmatprep.subr.mxu0 0.0
        %373 = vmatpush1.msra.mxu0 0.0
        %374 = vmatprep.subr.mxu0 0.0
        %375 = vmatpush1.msra.mxu0 0.0
        %376 = vmatprep.subr.mxu0 0.0
        %377 = vmatpush1.msra.mxu0 0.0
        %378 = vmatprep.mubr.f32.mxu0 0.0
        %379 = vmatmul.mubr.f32.gmra.mrb[0].mxu0 %v212
        %v380 = vpop.f32.mrb[0].mxu0
        %v381 = vadd.f32 %v199, %v380
        %v382 = vpop.f32.mrb[0].mxu0
        %v383 = vadd.f32 %v199, %v382
        %384 = vmatprep.mubr.f32.mxu0 0.0
        %385 = vmatmul.mubr.f32.gmra.mrb[0].mxu0 %v214
        %v386 = vpop.f32.mrb[0].mxu0
        %v387 = vadd.f32 %v204, %v386
        %v388 = vpop.f32.mrb[0].mxu0
        %v389 = vadd.f32 %v204, %v388
        %390 = vmatprep.mubr.f32.mxu0 0.0
        %391 = vmatmul.mubr.f32.gmra.mrb[0].mxu0 %v216
        %v392 = vpop.f32.mrb[0].mxu0
        %v393 = vadd.f32 %v209, %v392
        %v394 = vpop.f32.mrb[0].mxu0
        %v395 = vadd.f32 %v209, %v394
        %396 = vdwg.mxu0
        %vm397 = vcmp.ge.f32.partialorder %v298, 0.0
        %vm398 = vcmp.ge.f32.partialorder %v300, 0.0
        %vm399 = vcmp.ge.f32.partialorder %v381, 0.0
        %vm400 = vcmp.ge.f32.partialorder %v383, 0.0
        %vm401 = vcmp.ge.f32.partialorder %v304, 0.0
        %vm402 = vcmp.ge.f32.partialorder %v306, 0.0
        %vm403 = vcmp.ge.f32.partialorder %v387, 0.0
        %vm404 = vcmp.ge.f32.partialorder %v389, 0.0
        %vm405 = vcmp.ge.f32.partialorder %v310, 0.0
        %vm406 = vcmp.ge.f32.partialorder %v312, 0.0
        %vm407 = vcmp.ge.f32.partialorder %v393, 0.0
        %vm408 = vcmp.ge.f32.partialorder %v395, 0.0
        %v409 = vmul.f32 %v298, 0.3
        %v410 = vmul.f32 %v300, 0.3
        %v411 = vmul.f32 %v381, 0.3
        %v412 = vmul.f32 %v383, 0.3
        %v413 = vmul.f32 %v304, 0.3
        %v414 = vmul.f32 %v306, 0.3
        %v415 = vmul.f32 %v387, 0.3
        %v416 = vmul.f32 %v389, 0.3
        %v417 = vmul.f32 %v310, 0.3
        %v418 = vmul.f32 %v312, 0.3
        %v419 = vmul.f32 %v393, 0.3
        %v420 = vmul.f32 %v395, 0.3
        %v421 = vsel %vm397, %v298, %v409
        %v422 = vsel %vm398, %v300, %v410
        %v423 = vsel %vm399, %v381, %v411
        %v424 = vsel %vm400, %v383, %v412
        %v425 = vsel %vm401, %v304, %v413
        %v426 = vsel %vm402, %v306, %v414
        %v427 = vsel %vm403, %v387, %v415
        %v428 = vsel %vm404, %v389, %v416
        %v429 = vsel %vm405, %v310, %v417
        %v430 = vsel %vm406, %v312, %v418
        %v431 = vsel %vm407, %v393, %v419
        %v432 = vsel %vm408, %v395, %v420
        %v433 = vld [vmem:[%s2] sm:$0x3f]
        %435 = vset.pattern.permute.xlu0 20
        %436 = vperm.xlu0 %435, %v433
        %v437 = vpop.permute.xlu0 %436
        %vm439 = vcmask 162816
        %v440 = vsel %vm439, %v433, 0
        %vm442 = vcmask 1043456
        %v444 = vsel %vm442, %v429, 0
        %v447 = vsel %vm442, %v430, 0
        %v450 = vsel %vm442, %v431, 0
        %v453 = vsel %vm442, %v432, 0
        %455 = vmatprep.subr.mxu0 %v422
        %456 = vmatpush1.msra.mxu0 %v421
        %457 = vmatprep.subr.mxu0 %v426
        %458 = vmatpush1.msra.mxu0 %v425
        %459 = vmatprep.subr.mxu0 %v447
        %460 = vmatpush1.msra.mxu0 %v444
        %461 = vmatprep.subr.mxu0 0.0
        %462 = vmatpush1.msra.mxu0 0.0
        %463 = vmatprep.subr.mxu0 0.0
        %464 = vmatpush1.msra.mxu0 0.0
        %465 = vmatprep.subr.mxu0 0.0
        %466 = vmatpush1.msra.mxu0 0.0
        %467 = vmatprep.subr.mxu0 0.0
        %468 = vmatpush1.msra.mxu0 0.0
        %469 = vmatprep.subr.mxu0 0.0
        %470 = vmatpush1.msra.mxu0 0.0
        %471 = vmatprep.subr.mxu0 0.0
        %472 = vmatpush1.msra.mxu0 0.0
        %473 = vmatprep.subr.mxu0 0.0
        %474 = vmatpush1.msra.mxu0 0.0
        %475 = vmatprep.subr.mxu0 0.0
        %476 = vmatpush1.msra.mxu0 0.0
        %477 = vmatprep.subr.mxu0 0.0
        %478 = vmatpush1.msra.mxu0 0.0
        %479 = vmatprep.subr.mxu0 0.0
        %480 = vmatpush1.msra.mxu0 0.0
        %481 = vmatprep.subr.mxu0 0.0
        %482 = vmatpush1.msra.mxu0 0.0
        %483 = vmatprep.subr.mxu0 0.0
        %484 = vmatpush1.msra.mxu0 0.0
        %485 = vmatprep.subr.mxu0 0.0
        %486 = vmatpush1.msra.mxu0 0.0
        %487 = vmatprep.subr.mxu0 0.0
        %488 = vmatpush1.msra.mxu0 0.0
        %489 = vmatprep.subr.mxu0 0.0
        %490 = vmatpush1.msra.mxu0 0.0
        %491 = vmatprep.subr.mxu0 0.0
        %492 = vmatpush1.msra.mxu0 0.0
        %493 = vmatprep.subr.mxu0 0.0
        %494 = vmatpush1.msra.mxu0 0.0
        %495 = vmatprep.subr.mxu0 0.0
        %496 = vmatpush1.msra.mxu0 0.0
        %497 = vmatprep.subr.mxu0 0.0
        %498 = vmatpush1.msra.mxu0 0.0
        %499 = vmatprep.subr.mxu0 0.0
        %500 = vmatpush1.msra.mxu0 0.0
        %501 = vmatprep.subr.mxu0 0.0
        %502 = vmatpush1.msra.mxu0 0.0
        %503 = vmatprep.subr.mxu0 0.0
        %504 = vmatpush1.msra.mxu0 0.0
        %505 = vmatprep.subr.mxu0 0.0
        %506 = vmatpush1.msra.mxu0 0.0
        %507 = vmatprep.subr.mxu0 0.0
        %508 = vmatpush1.msra.mxu0 0.0
        %509 = vmatprep.subr.mxu0 0.0
        %510 = vmatpush1.msra.mxu0 0.0
        %511 = vmatprep.subr.mxu0 0.0
        %512 = vmatpush1.msra.mxu0 0.0
        %513 = vmatprep.subr.mxu0 0.0
        %514 = vmatpush1.msra.mxu0 0.0
        %515 = vmatprep.subr.mxu0 0.0
        %516 = vmatpush1.msra.mxu0 0.0
        %517 = vmatprep.subr.mxu0 0.0
        %518 = vmatpush1.msra.mxu0 0.0
        %519 = vmatprep.mubr.f32.mxu0 0.0
        %520 = vmatmul.mubr.f32.gmra.mrb[0].mxu0 %v440
        %v521 = vpop.f32.mrb[0].mxu0
        %v522 = vadd.f32 %v437, %v521
        %v523 = vpop.f32.mrb[0].mxu0
        %v524 = vadd.f32 %v437, %v523
        %525 = vdwg.mxu0
        %526 = vmatprep.subr.mxu0 %v424
        %527 = vmatpush1.msra.mxu0 %v423
        %528 = vmatprep.subr.mxu0 %v428
        %529 = vmatpush1.msra.mxu0 %v427
        %530 = vmatprep.subr.mxu0 %v453
        %531 = vmatpush1.msra.mxu0 %v450
        %532 = vmatprep.subr.mxu0 0.0
        %533 = vmatpush1.msra.mxu0 0.0
        %534 = vmatprep.subr.mxu0 0.0
        %535 = vmatpush1.msra.mxu0 0.0
        %536 = vmatprep.subr.mxu0 0.0
        %537 = vmatpush1.msra.mxu0 0.0
        %538 = vmatprep.subr.mxu0 0.0
        %539 = vmatpush1.msra.mxu0 0.0
        %540 = vmatprep.subr.mxu0 0.0
        %541 = vmatpush1.msra.mxu0 0.0
        %542 = vmatprep.subr.mxu0 0.0
        %543 = vmatpush1.msra.mxu0 0.0
        %544 = vmatprep.subr.mxu0 0.0
        %545 = vmatpush1.msra.mxu0 0.0
        %546 = vmatprep.subr.mxu0 0.0
        %547 = vmatpush1.msra.mxu0 0.0
        %548 = vmatprep.subr.mxu0 0.0
        %549 = vmatpush1.msra.mxu0 0.0
        %550 = vmatprep.subr.mxu0 0.0
        %551 = vmatpush1.msra.mxu0 0.0
        %552 = vmatprep.subr.mxu0 0.0
        %553 = vmatpush1.msra.mxu0 0.0
        %554 = vmatprep.subr.mxu0 0.0
        %555 = vmatpush1.msra.mxu0 0.0
        %556 = vmatprep.subr.mxu0 0.0
        %557 = vmatpush1.msra.mxu0 0.0
        %558 = vmatprep.subr.mxu0 0.0
        %559 = vmatpush1.msra.mxu0 0.0
        %560 = vmatprep.subr.mxu0 0.0
        %561 = vmatpush1.msra.mxu0 0.0
        %562 = vmatprep.subr.mxu0 0.0
        %563 = vmatpush1.msra.mxu0 0.0
        %564 = vmatprep.subr.mxu0 0.0
        %565 = vmatpush1.msra.mxu0 0.0
        %566 = vmatprep.subr.mxu0 0.0
        %567 = vmatpush1.msra.mxu0 0.0
        %568 = vmatprep.subr.mxu0 0.0
        %569 = vmatpush1.msra.mxu0 0.0
        %570 = vmatprep.subr.mxu0 0.0
        %571 = vmatpush1.msra.mxu0 0.0
        %572 = vmatprep.subr.mxu0 0.0
        %573 = vmatpush1.msra.mxu0 0.0
        %574 = vmatprep.subr.mxu0 0.0
        %575 = vmatpush1.msra.mxu0 0.0
        %576 = vmatprep.subr.mxu0 0.0
        %577 = vmatpush1.msra.mxu0 0.0
        %578 = vmatprep.subr.mxu0 0.0
        %579 = vmatpush1.msra.mxu0 0.0
        %580 = vmatprep.subr.mxu0 0.0
        %581 = vmatpush1.msra.mxu0 0.0
        %582 = vmatprep.subr.mxu0 0.0
        %583 = vmatpush1.msra.mxu0 0.0
        %584 = vmatprep.subr.mxu0 0.0
        %585 = vmatpush1.msra.mxu0 0.0
        %586 = vmatprep.subr.mxu0 0.0
        %587 = vmatpush1.msra.mxu0 0.0
        %588 = vmatprep.subr.mxu0 0.0
        %589 = vmatpush1.msra.mxu0 0.0
        %590 = vmatprep.mubr.f32.mxu0 0.0
        %591 = vmatmul.mubr.f32.gmra.mrb[0].mxu0 %v440
        %v592 = vpop.f32.mrb[0].mxu0
        %v593 = vadd.f32 %v437, %v592
        %v594 = vpop.f32.mrb[0].mxu0
        %v595 = vadd.f32 %v437, %v594
        %596 = vdwg.mxu0
        %597 = vst [vmem:[%s186] sm:$0x3f] %v522
        %598 = vst [vmem:[%s186 + $0x8] sm:$0x3f] %v524
        %599 = vst [vmem:[%s186 + $0x10] sm:$0x3f] %v593
        %600 = vst [vmem:[%s186 + $0x18] sm:$0x3f] %v595
        %s601 = sand.u32 %s96, 1
        %s602 = scalar_lea.sflag [#allocation4], %s601
        %s603 = sand.u32 %s96, 1
        %s604 = smul.addr %s603, 32
        %s605 = scalar_lea.vmem [#allocation5], %s604
        // Predicated region
        $region37: #{tpu_custom_call.1} parent=31 // pred_check
          %p606 = pneg %p106
        $region38: #{tpu_custom_call.1} parent=31 // pred_check_branch
          %608 = sbr.rel (%p606) target = $region40
        $region39: #{tpu_custom_call.1} parent=31 // pred_region
          %s609 = smul.u32 4, %s20
          %s611 = ssub.s32 512, 512
          %612 = vsyncadd %s602, %s611
          %s613 = smul.addr %s609, 128
          %s614 = scalar_lea.hbm %s3, %s613
          %s616 = sshll.u32 %s605, 4
          %s617 = int_to_ptr.vmem [resolvable:$true] %s616
          %619 = dma.vmem_to_hbm [thread:$0]  %s617, 512, %s614, %s602
        $region40: #{tpu_custom_call.1} parent=31 // pred_fallthru
          _
      $region32: #{tpu_custom_call.1} parent=5 // pred_fallthru
        _
      %p620 = scmp.le.s32.totalorder 2, %s15
      // Predicated region
      $region41: #{tpu_custom_call.1} parent=5 // pred_check
        %p621 = pneg %p620
      $region42: #{tpu_custom_call.1} parent=5 // pred_check_branch
        %623 = sbr.rel (%p621) target = $region44
      $region43: #{tpu_custom_call.1} parent=5 // pred_region
        %s624 = ssub.s32 %s15, 2
        // Predicated region
        $region45: #{tpu_custom_call.1} parent=43 // pred_check
          %p625 = pneg %p112
        $region46: #{tpu_custom_call.1} parent=43 // pred_check_branch
          %627 = sbr.rel (%p625) target = $region48
        $region47: #{tpu_custom_call.1} parent=43 // pred_region
          %s628 = sand.u32 %s97, 1
          %s629 = scalar_lea.sflag [#allocation4], %s628
          %s630 = sand.u32 %s97, 1
          %s631 = smul.addr %s630, 32
          %s632 = scalar_lea.vmem [#allocation5], %s631
          %633 = dma.done %s629, 512
        $region48: #{tpu_custom_call.1} parent=43 // pred_fallthru
          _
      $region44: #{tpu_custom_call.1} parent=5 // pred_fallthru
        _
    $region6: #{tpu_custom_call.1} parent=1 // loop_footer
      %s19 = sadd.s32 1, %s15
    $region7: #{tpu_custom_call.1} parent=1 // loop_footer_branch
      %14 = sbr.rel target = $region3
    $region8: #{tpu_custom_call.1} parent=1 // loop_exit
      _
    %634 = vsyncpa [#allocation3], 1
    %s635 = scalar_lea.sflag [#allocation3], 1
    %636 = vsyncpa %s635, 1
    %637 = vsyncpa [#allocation4], 1
    %s638 = scalar_lea.sflag [#allocation4], 1
    %639 = vsyncpa %s638, 1

</llo_original>
